<compile_context>
chip_gen: v7x
topology: tpu7x:2x2x1
jax: 0.10.0
libtpu: 0.0.40
codegen_flags: <defaults>
</compile_context>

<pallas_src>
import jax
import jax.numpy as jnp
from jax.experimental import pallas as pl
from jax.experimental.pallas import tpu as pltpu


def _adaptive_softmax_rows_kernel(logits_ref, target_ref, logpt_ref):
    """One batch tile: per-row log p(target) = logit[target] - logsumexp(logits)."""
    logits = logits_ref[...].astype(jnp.float32)                    # (TN, C) f32 compute
    tgt = target_ref[...]                                           # (TN, 1) int32
    c = logits.shape[-1]

    row_max = jnp.max(logits, axis=-1, keepdims=True)               # (TN, 1)
    shifted = logits - row_max                                      # (TN, C), reused twice
    sum_exp = jnp.sum(jnp.exp(shifted), axis=-1, keepdims=True)     # (TN, 1)

    # Gather the shifted logit at the target class via select (no dynamic gather on
    # TPU); the (1, C) iota broadcasts against the (TN, 1) targets -> no (TN, C) int32
    # temporary is materialized.
    col_ids = jax.lax.broadcasted_iota(jnp.int32, (1, c), 1)
    tgt_shifted = jnp.sum(
        jnp.where(col_ids == tgt, shifted, 0.0), axis=-1, keepdims=True
    )                                                               # (TN, 1)

    # logit[t] - logsumexp == shifted[t] - log(sum_exp): the row max cancels.
    logpt_ref[...] = tgt_shifted - jnp.log(sum_exp)


def _choose_tile_rows(n, c, itemsize, per_buffer_bytes):
    """Batch-tile rows: fill the per-buffer byte budget, keep >=2 (ideally >=4) blocks."""
    mult = 16 if itemsize < 4 else 8    # sublane packing: bf16 packs 16 rows, f32 packs 8
    if n <= mult:
        return n                        # single block, block dims == array dims
    # Per-row VMEM cost: logits row + lane-padded (TN, 1) target and output rows.
    row_bytes = c * itemsize + 2 * 128 * 4
    tn_budget = max(mult, (per_buffer_bytes // row_bytes) // mult * mult)
    if n >= 4 * mult:
        min_blocks = 4                  # pipelining overlap + v7x megacore
    elif n >= 2 * mult:
        min_blocks = 2
    else:
        min_blocks = 1
    per_block = -(-n // min_blocks)
    tn_split = -(-per_block // mult) * mult
    tn = min(tn_budget, tn_split)
    if tn >= n:
        return n                        # whole batch in one exact block
    return tn


def _vmem_plan(n, c, itemsize):
    """Generation-aware (tile_rows, vmem_limit_bytes)."""
    phys = 128 * 1024 * 1024            # v5e/v6e physical VMEM; v7x has 64 MiB
    try:
        cap = getattr(pltpu.get_tpu_info(), "vmem_capacity_bytes", None)
        if cap:
            phys = int(cap)
    except Exception:
        pass
    limit = min(phys // 2, 64 * 1024 * 1024)   # v5e/v6e: 64 MiB, v7x: 32 MiB
    per_buffer = limit // 4                    # 2 double-buffered logits tiles ~= half
    tn = _choose_tile_rows(n, c, itemsize, per_buffer)
    # Double-buffered logits + lane-padded target/output tiles + slack; bump the limit
    # if the minimum tile of a huge class count needs more than the default budget.
    need = 2 * tn * c * itemsize + 4 * tn * 128 * 4 + (2 << 20)
    if need > limit:
        limit = min(need, int(phys * 0.85))
    return tn, limit


def adaptive_softmax(output, target, focusing_param=2.0):
    """output: (N, C) float logits (f32 or bf16); target: (N,) int class indices.

    Returns the scalar adaptive (focal) softmax loss, matching the PyTorch module.
    """
    n, c = output.shape
    itemsize = jnp.dtype(output.dtype).itemsize
    tn, vmem_limit = _vmem_plan(n, c, itemsize)
    num_blocks = pl.cdiv(n, tn)

    tgt = target.astype(jnp.int32).reshape(n, 1)

    logpt_rows = pl.pallas_call(
        _adaptive_softmax_rows_kernel,
        out_shape=jax.ShapeDtypeStruct((n, 1), jnp.float32),
        grid=(num_blocks,),
        in_specs=[
            pl.BlockSpec((tn, c), lambda i: (i, 0)),   # logits tile (full class axis)
            pl.BlockSpec((tn, 1), lambda i: (i, 0)),   # target tile
        ],
        out_specs=pl.BlockSpec((tn, 1), lambda i: (i, 0)),
        compiler_params=pltpu.CompilerParams(
            dimension_semantics=("parallel",),         # independent blocks -> megacore on v7x
            vmem_limit_bytes=vmem_limit,
        ),
        cost_estimate=pl.CostEstimate(
            flops=5 * n * c,
            transcendentals=n * c,
            bytes_accessed=n * c * itemsize + 8 * n,
        ),
    )(output, tgt)

    # batch mean of log p(target)  ==  -F.cross_entropy(output, target)
    logpt = jnp.sum(logpt_rows) / jnp.float32(n)
    # exact arithmetic gives logpt <= 0; clamp so (1 - pt)**gamma never sees a
    # rounding-induced negative base with a non-integer gamma.
    logpt = jnp.minimum(logpt, 0.0)
    pt = jnp.exp(logpt)
    return -((1.0 - pt) ** focusing_param) * logpt


def _reference(output, target, focusing_param=2.0):
    # pure-JAX reference of the PyTorch forward
    logits = output.astype(jnp.float32)
    logprobs = jax.nn.log_softmax(logits, axis=-1)
    per = jnp.take_along_axis(
        logprobs, target.reshape(-1, 1).astype(jnp.int32), axis=-1
    )
    logpt = jnp.mean(per)                       # = -F.cross_entropy(output, target)
    pt = jnp.exp(logpt)
    return -((1.0 - pt) ** focusing_param) * logpt


if __name__ == "__main__":
    key = jax.random.PRNGKey(0)

    # case 1: small aligned batch, f32 (single exact block)
    k1, k2, key = jax.random.split(key, 3)
    out1 = jax.random.normal(k1, (8, 32), dtype=jnp.float32)
    tgt1 = jax.random.randint(k2, (8,), 0, 32, dtype=jnp.int32)
    loss1 = jax.block_until_ready(adaptive_softmax(out1, tgt1, focusing_param=2.0))
    ref1 = _reference(out1, tgt1, focusing_param=2.0)
    assert jnp.allclose(loss1, ref1, rtol=1e-5, atol=1e-5), (loss1, ref1)

    # case 2: multi-block with a ragged last block (no padding copy), f32
    k3, k4, key = jax.random.split(key, 3)
    out2 = jax.random.normal(k3, (20, 40), dtype=jnp.float32)
    tgt2 = jax.random.randint(k4, (20,), 0, 40, dtype=jnp.int32)
    loss2 = jax.block_until_ready(adaptive_softmax(out2, tgt2, focusing_param=2.0))
    ref2 = _reference(out2, tgt2, focusing_param=2.0)
    assert jnp.allclose(loss2, ref2, rtol=1e-5, atol=1e-5), (loss2, ref2)

    # case 3: batch not a multiple of 8, single exact block, f32
    k5, k6, key = jax.random.split(key, 3)
    out3 = jax.random.normal(k5, (13, 40), dtype=jnp.float32)
    tgt3 = jax.random.randint(k6, (13,), 0, 40, dtype=jnp.int32)
    loss3 = jax.block_until_ready(adaptive_softmax(out3, tgt3, focusing_param=2.0))
    ref3 = _reference(out3, tgt3, focusing_param=2.0)
    assert jnp.allclose(loss3, ref3, rtol=1e-5, atol=1e-5), (loss3, ref3)

    # case 4: bf16 logits, multi-block with a ragged last block, f32 compute in-kernel
    k7, k8, key = jax.random.split(key, 3)
    out4 = jax.random.normal(k7, (40, 64), dtype=jnp.float32).astype(jnp.bfloat16)
    tgt4 = jax.random.randint(k8, (40,), 0, 64, dtype=jnp.int32)
    loss4 = jax.block_until_ready(adaptive_softmax(out4, tgt4, focusing_param=2.0))
    ref4 = _reference(out4, tgt4, focusing_param=2.0)
    assert jnp.allclose(loss4, ref4, rtol=1e-4, atol=1e-4), (loss4, ref4)

    print("KERNEL_OK")
</pallas_src>

<mosaic_0001>
module attributes {stable_mosaic.version = 11 : i64} {
  func.func @_adaptive_softmax_rows_kernel(%arg0: i32, %arg1: memref<8x32xf32, #tpu.memory_space<vmem>>, %arg2: memref<8x1xi32, #tpu.memory_space<vmem>>, %arg3: memref<8x1xf32, #tpu.memory_space<vmem>>) attributes {dimension_semantics = [#tpu.dimension_semantics<parallel>], iteration_bounds = array<i64: 1>, scalar_prefetch = 0 : i64, scratch_operands = 0 : i64, tpu.core_type = #tpu.core_type<tc>, window_params = [{transform_indices = @transform_0, window_bounds = array<i64: 8, 32>}, {transform_indices = @transform_1, window_bounds = array<i64: 8, 1>}, {transform_indices = @transform_2, window_bounds = array<i64: 8, 1>}]} {
    %c0 = arith.constant 0 : index
    %c0_0 = arith.constant 0 : index
    %0 = vector.load %arg1[%c0, %c0_0] : memref<8x32xf32, #tpu.memory_space<vmem>>, vector<8x32xf32>
    %c0_1 = arith.constant 0 : index
    %c0_2 = arith.constant 0 : index
    %1 = vector.load %arg2[%c0_1, %c0_2] : memref<8x1xi32, #tpu.memory_space<vmem>>, vector<8x1xi32>
    %cst = arith.constant dense<0xFF800000> : vector<8xf32>
    %2 = vector.multi_reduction <maximumf>, %0, %cst [1] : vector<8x32xf32> to vector<8xf32>
    %3 = vector.shape_cast %2 : vector<8xf32> to vector<8x1xf32>
    %4 = vector.broadcast %3 : vector<8x1xf32> to vector<8x32xf32>
    %5 = arith.subf %0, %4 : vector<8x32xf32>
    %6 = math.exp %5 : vector<8x32xf32>
    %cst_3 = arith.constant dense<0.000000e+00> : vector<8xf32>
    %7 = vector.multi_reduction <add>, %6, %cst_3 [1] : vector<8x32xf32> to vector<8xf32>
    %8 = vector.shape_cast %7 : vector<8xf32> to vector<8x1xf32>
    %9 = tpu.iota {dimensions = array<i32: 1>} : vector<1x32xi32>
    %10 = vector.broadcast %9 : vector<1x32xi32> to vector<8x32xi32>
    %11 = vector.broadcast %1 : vector<8x1xi32> to vector<8x32xi32>
    %12 = arith.cmpi eq, %10, %11 : vector<8x32xi32>
    %cst_4 = arith.constant 0.000000e+00 : f32
    %13 = vector.broadcast %cst_4 : f32 to vector<8x32xf32>
    %14 = arith.select %12, %5, %13 : vector<8x32xi1>, vector<8x32xf32>
    %cst_5 = arith.constant dense<0.000000e+00> : vector<8xf32>
    %15 = vector.multi_reduction <add>, %14, %cst_5 [1] : vector<8x32xf32> to vector<8xf32>
    %16 = vector.shape_cast %15 : vector<8xf32> to vector<8x1xf32>
    %17 = math.log %8 : vector<8x1xf32>
    %18 = arith.subf %16, %17 : vector<8x1xf32>
    %c0_6 = arith.constant 0 : index
    %c0_7 = arith.constant 0 : index
    %19 = vector.load %arg3[%c0_6, %c0_7] : memref<8x1xf32, #tpu.memory_space<vmem>>, vector<8x1xf32>
    tpu.vector_store %arg3[%c0_6, %c0_7], %18 {strides = array<i32>} : memref<8x1xf32, #tpu.memory_space<vmem>>, vector<8x1xf32>,
    return
  }
  func.func @transform_0(%arg0: i32) -> (i32, i32) {
    %c0_i32 = arith.constant 0 : i32
    %c0_i32_0 = arith.constant 0 : i32
    return %arg0, %c0_i32 : i32, i32
  }
  func.func @transform_1(%arg0: i32) -> (i32, i32) {
    %c0_i32 = arith.constant 0 : i32
    %c0_i32_0 = arith.constant 0 : i32
    return %arg0, %c0_i32 : i32, i32
  }
  func.func @transform_2(%arg0: i32) -> (i32, i32) {
    %c0_i32 = arith.constant 0 : i32
    %c0_i32_0 = arith.constant 0 : i32
    return %arg0, %c0_i32 : i32, i32
  }
}

</mosaic_0001>

<llo_original>
// kernel: tpu_custom_call.1
$region0: #{tpu_custom_call.1}
  #allocation0 [shape = 'u32[]', space=smem, size = 0x4, offset = 0x4, fixed_abs, tag = 'smem constant byte address 0x4 - core index']
  #allocation1 [shape = 'u32[144,128]{1,0:T(1,128)}', space=vmem, size = 0x12000, scoped, tag = 'internal scratch']
  %s0 = inlined_call_operand.hbm [shape: f32[8,32], index: 0, kind: input, shape index: {}]
  %s1 = inlined_call_operand.hbm [shape: s32[8,1], index: 1, kind: input, shape index: {}]
  %s2 = inlined_call_operand.hbm [shape: f32[8,1], index: 2, kind: output, shape index: {}]
  %s3 = sld [smem:[#allocation0]]
  $region26: #{tpu_custom_call.1} parent=0
    _
  %s5 = ssub.s32 1, %s3
  %s6 = scalar_select 0, %s5, %s3
  $region1: #{tpu_custom_call.1} parent=0
    #allocation2 [shape = 'u8[4096]{0}', space=vmem, size = 0x1000, scoped, tag = 'input window, operand 0, single buffered']
    #allocation3 [shape = 's32[1]{0}', space=sflag, size = 0x4, scoped, tag = 'scoped memory for tpu_custom_call.1']
    #allocation4 [shape = 's32[1]{0}', space=sflag, size = 0x4, scoped, tag = 'scoped memory for tpu_custom_call.1']
    #allocation5 [shape = 'u8[4096]{0}', space=vmem, size = 0x1000, scoped, tag = 'input window, operand 1, single buffered']
    #allocation6 [shape = 's32[1]{0}', space=sflag, size = 0x4, scoped, tag = 'scoped memory for tpu_custom_call.1']
    #allocation7 [shape = 'u8[4096]{0}', space=vmem, size = 0x1000, scoped, tag = 'output window, operand 0, single buffered']
    %7 = vsyncpa [#allocation3], 0
    %8 = vsyncpa [#allocation6], 0
    %9 = vsyncpa [#allocation4], 0
    // Predicated region
    $region2: #{tpu_custom_call.1} parent=1 // pred_check
      _
    $region3: #{tpu_custom_call.1} parent=1 // pred_check_branch
      %11 = sbr.rel (0) target = $region5
    $region4: #{tpu_custom_call.1} parent=1 // pred_region
      %s13 = ssub.s32 128, 128
      %14 = vsyncadd [#allocation3], %s13
      %s16 = sshll.u32 [#allocation2], 4
      %s17 = int_to_ptr.vmem [resolvable:$true] %s16
      %19 = dma.hbm_to_vmem [thread:$0]  %s0, 128, %s17, [#allocation3]
    $region5: #{tpu_custom_call.1} parent=1 // pred_fallthru
      _
    // Predicated region
    $region6: #{tpu_custom_call.1} parent=1 // pred_check
      _
    $region7: #{tpu_custom_call.1} parent=1 // pred_check_branch
      %21 = sbr.rel (0) target = $region9
    $region8: #{tpu_custom_call.1} parent=1 // pred_region
      %s23 = ssub.s32 128, 128
      %24 = vsyncadd [#allocation6], %s23
      %s26 = sshll.u32 [#allocation5], 4
      %s27 = int_to_ptr.vmem [resolvable:$true] %s26
      %29 = dma.hbm_to_vmem [thread:$0]  %s1, 128, %s27, [#allocation6]
    $region9: #{tpu_custom_call.1} parent=1 // pred_fallthru
      _
    // Predicated region
    $region10: #{tpu_custom_call.1} parent=1 // pred_check
      _
    $region11: #{tpu_custom_call.1} parent=1 // pred_check_branch
      %31 = sbr.rel (0) target = $region13
    $region12: #{tpu_custom_call.1} parent=1 // pred_region
      %32 = dma.done [#allocation3], 128
    $region13: #{tpu_custom_call.1} parent=1 // pred_fallthru
      _
    // Predicated region
    $region14: #{tpu_custom_call.1} parent=1 // pred_check
      _
    $region15: #{tpu_custom_call.1} parent=1 // pred_check_branch
      %34 = sbr.rel (0) target = $region17
    $region16: #{tpu_custom_call.1} parent=1 // pred_region
      %35 = dma.done [#allocation6], 128
    $region17: #{tpu_custom_call.1} parent=1 // pred_fallthru
      _
    %v36 = vld [vmem:[#allocation2] sm:$0xff]
    %v37 = vld [vmem:[#allocation5] sm:$0xff]
    %vm38 = vcmask 261120
    %v39 = vsel %vm38, %v36, -inf
    %40 = vmax.xlane.f32.xlu0 %v39
    %v41 = vpop.xlane.xlu0 %40
    %v42 = vsub.f32 %v36, %v41
    %v43 = vmul.f32 %v42, 1.442695
    %v44 = vpow.pop %v43
    %v45 = vsel %vm38, %v44, 0.0
    %46 = vadd.xlane.f32.xlu0 %v45
    %v47 = vpop.xlane.xlu0 %46
    %v48 = vlaneseq
    %v49 = vand.u32 %v48, 127
    %50 = vset.pattern.permute.xlu0 0
    %51 = vperm.xlu0 %50, %v37
    %v52 = vpop.permute.xlu0 %51
    %vm53 = vcmp.eq.s32.totalorder %v49, %v52
    %v54 = vsel %vm53, %v42, 0.0
    %v55 = vsel %vm38, %v54, 0.0
    %56 = vadd.xlane.f32.xlu0 %v55
    %v57 = vpop.xlane.xlu0 %56
    %v58 = vlog2.pop %v47
    %v59 = vmul.f32 %v58, 0.6931472
    %v60 = vsub.f32 %v57, %v59
    %vm61 = vcmask 7168
    %62 = vst.msk [vmem:[#allocation7] sm:$0xff] %vm61, %v60
    // Predicated region
    $region18: #{tpu_custom_call.1} parent=1 // pred_check
      _
    $region19: #{tpu_custom_call.1} parent=1 // pred_check_branch
      %64 = sbr.rel (0) target = $region21
    $region20: #{tpu_custom_call.1} parent=1 // pred_region
      %s66 = ssub.s32 128, 128
      %67 = vsyncadd [#allocation4], %s66
      %s69 = sshll.u32 [#allocation7], 4
      %s70 = int_to_ptr.vmem [resolvable:$true] %s69
      %72 = dma.vmem_to_hbm [thread:$0]  %s70, 128, %s2, [#allocation4]
    $region21: #{tpu_custom_call.1} parent=1 // pred_fallthru
      _
    // Predicated region
    $region22: #{tpu_custom_call.1} parent=1 // pred_check
      _
    $region23: #{tpu_custom_call.1} parent=1 // pred_check_branch
      %74 = sbr.rel (0) target = $region25
    $region24: #{tpu_custom_call.1} parent=1 // pred_region
      %75 = dma.done [#allocation4], 128
    $region25: #{tpu_custom_call.1} parent=1 // pred_fallthru
      _
    %76 = vsyncpa [#allocation3], 1
    %77 = vsyncpa [#allocation6], 1
    %78 = vsyncpa [#allocation4], 1

</llo_original>
